<compile_context>
chip_gen: v7x
topology: tpu7x:2x2x1
jax: 0.10.0
libtpu: 0.0.40
codegen_flags: <defaults>
</compile_context>

<pallas_src>
import jax
import jax.numpy as jnp
from jax.experimental import pallas as pl
from jax.experimental.pallas import tpu as pltpu

ENTRADAS = 5       # Airfoil Self-Noise dataset: 5 input features
HIDDEN1 = 100
HIDDEN2 = 50
OUT = 1

ENTRADAS_PAD = 8   # 5   -> 8   (sublane multiple)
H1_PAD = 128       # 100 -> 128 (lane/sublane multiple)
H2_PAD = 64        # 50  -> 64  (sublane multiple)


def _round_up(n, m):
    return ((n + m - 1) // m) * m


def _vmem_tile_cap(compute_dtype):
    """Max batch-tile so per-tile VMEM stays well under v7x's scoped limit."""
    dsize = jnp.dtype(compute_dtype).itemsize
    # f32 intermediates h1/h2 + double-buffered x tile + double-buffered
    # (sublane-padded) output tile, per batch row.
    per_row = (H1_PAD + H2_PAD) * 4 + 2 * (ENTRADAS_PAD * dsize) + 2 * (8 * 4)
    budget = 24 * 1024 * 1024
    return max(128, (budget // per_row) // 128 * 128)


def _choose_tile(B, batch_tile, compute_dtype):
    """Pick (tb, n_steps): tb a multiple of 128 with tb * n_steps >= B.

    Aims for >= 2 (even) grid steps when B > 128 so both v7x TensorCores get
    work, and balances the tiles so the last one is not mostly zero padding.
    """
    b128 = _round_up(max(B, 1), 128)
    cap = max(128, min(_round_up(batch_tile, 128), _vmem_tile_cap(compute_dtype)))
    n_steps = pl.cdiv(b128, cap)
    if b128 > 128:
        n_steps = max(n_steps, 2)       # feed both v7x TensorCores
        if n_steps % 2:
            n_steps += 1                # even split across the 2 TCs
    tb = _round_up(pl.cdiv(b128, n_steps), 128)
    n_steps = pl.cdiv(b128, tb)         # re-derive (tile rounding may drop a step)
    return tb, n_steps


def mlp_kernel(x_ref, w1_ref, b1_ref, w2_ref, b2_ref, w3_ref, b3_ref, o_ref):
    # x_ref:  (ENTRADAS_PAD, TB)  compute dtype, batch on lanes
    # w1_ref: (H1_PAD, ENTRADAS_PAD), b1_ref: (H1_PAD, 1)  [bias f32]
    # w2_ref: (H2_PAD, H1_PAD),       b2_ref: (H2_PAD, 1)  [bias f32]
    # w3_ref: (H2_PAD, 1) f32,        b3_ref: (1, 1) f32
    # o_ref:  (1, TB) f32   lane-dense output row
    h1 = jnp.dot(w1_ref[...], x_ref[...], preferred_element_type=jnp.float32)
    h1 = jnp.maximum(h1 + b1_ref[...], 0.0)                  # (H1_PAD, TB) f32

    # Second matmul in the compute dtype (bf16 path re-quantizes h1), f32 acc.
    h2 = jnp.dot(w2_ref[...], h1.astype(w2_ref.dtype),
                 preferred_element_type=jnp.float32)
    h2 = jnp.maximum(h2 + b2_ref[...], 0.0)                  # (H2_PAD, TB) f32

    # Final layer (out_features = 1): VPU multiply + XLU sublane reduction.
    h3 = jnp.sum(h2 * w3_ref[...], axis=0, keepdims=True)    # (1, TB)
    o_ref[...] = jnp.maximum(h3 + b3_ref[...], 0.0).astype(o_ref.dtype)


def _mlp_pallas(xt, packed_params, tb):
    """Core pallas call. xt: (ENTRADAS_PAD, b_pad), b_pad % tb == 0."""
    w1p, b1p, w2p, b2p, w3p, b3p = packed_params
    b_pad = xt.shape[1]
    grid = (b_pad // tb,)

    flops = 2 * b_pad * (H1_PAD * ENTRADAS_PAD + H2_PAD * H1_PAD + H2_PAD)
    param_bytes = sum(int(p.size) * p.dtype.itemsize for p in packed_params)
    bytes_accessed = int(xt.size) * xt.dtype.itemsize + b_pad * 4 + param_bytes

    return pl.pallas_call(
        mlp_kernel,
        out_shape=jax.ShapeDtypeStruct((1, b_pad), jnp.float32),
        grid=grid,
        in_specs=[
            # batch-tiled input (batch on lanes)
            pl.BlockSpec((ENTRADAS_PAD, tb), lambda i: (0, i)),
            # weights / biases: full-shape blocks, resident across the grid
            pl.BlockSpec(w1p.shape, lambda i: (0, 0)),
            pl.BlockSpec(b1p.shape, lambda i: (0, 0)),
            pl.BlockSpec(w2p.shape, lambda i: (0, 0)),
            pl.BlockSpec(b2p.shape, lambda i: (0, 0)),
            pl.BlockSpec(w3p.shape, lambda i: (0, 0)),
            pl.BlockSpec(b3p.shape, lambda i: (0, 0)),
        ],
        out_specs=pl.BlockSpec((1, tb), lambda i: (0, i)),
        compiler_params=pltpu.CompilerParams(
            dimension_semantics=("parallel",)),
        cost_estimate=pl.CostEstimate(
            flops=flops, transcendentals=0, bytes_accessed=bytes_accessed),
    )(xt, w1p, b1p, w2p, b2p, w3p, b3p)


def mlp_forward(x, packed_params, *, batch_tile=16384):
    """PyTorch-convention entry point.  x: (B, ENTRADAS) -> (B, 1) f32.

    NOTE: the transpose+pad below is one extra HBM pass over x; large-batch
    callers should keep x feature-major upstream and use
    mlp_forward_feature_major instead.
    """
    compute_dtype = packed_params[0].dtype
    B = x.shape[0]
    tb, n_steps = _choose_tile(B, batch_tile, compute_dtype)
    b_pad = tb * n_steps

    xt = jnp.zeros((ENTRADAS_PAD, b_pad), compute_dtype)
    xt = xt.at[:ENTRADAS, :B].set(x.T.astype(compute_dtype))

    out = _mlp_pallas(xt, packed_params, tb)
    return out[0, :B][:, None]


def mlp_forward_feature_major(xt, packed_params, *, batch_tile=16384):
    """Zero-extra-pass entry point.  xt: (ENTRADAS or ENTRADAS_PAD, B) -> (B, 1)."""
    compute_dtype = packed_params[0].dtype
    B = xt.shape[1]
    tb, n_steps = _choose_tile(B, batch_tile, compute_dtype)
    b_pad = tb * n_steps
    if xt.shape[0] != ENTRADAS_PAD or xt.shape[1] != b_pad or xt.dtype != compute_dtype:
        buf = jnp.zeros((ENTRADAS_PAD, b_pad), compute_dtype)
        xt = buf.at[:xt.shape[0], :B].set(xt.astype(compute_dtype))
    out = _mlp_pallas(xt, packed_params, tb)
    return out[0, :B][:, None]


def init_params(key):
    """Deterministic init mimicking nn.Linear (uniform +/- 1/sqrt(fan_in)).

    Weights are kept in the PyTorch (out_features, in_features) convention.
    """
    ks = jax.random.split(key, 6)

    def lin(kw, kb, fan_in, fan_out):
        bound = 1.0 / jnp.sqrt(fan_in)
        w = jax.random.uniform(kw, (fan_out, fan_in), jnp.float32, -bound, bound)
        b = jax.random.uniform(kb, (fan_out,), jnp.float32, -bound, bound)
        return w, b

    w1, b1 = lin(ks[0], ks[1], ENTRADAS, HIDDEN1)
    w2, b2 = lin(ks[2], ks[3], HIDDEN1, HIDDEN2)
    w3, b3 = lin(ks[4], ks[5], HIDDEN2, OUT)
    return (w1, b1, w2, b2, w3, b3)


def pack_params(params, compute_dtype=jnp.float32):
    """Zero-pad (5,100,50) -> (8,128,64) and lay weights out feature-major.

    W1/W2 are stored in `compute_dtype` (bf16 path halves the MXU-input HBM
    traffic); biases, W3 and the output stay f32.
    """
    w1, b1, w2, b2, w3, b3 = params
    w1p = jnp.zeros((H1_PAD, ENTRADAS_PAD), jnp.float32)
    w1p = w1p.at[:HIDDEN1, :ENTRADAS].set(w1).astype(compute_dtype)
    b1p = jnp.zeros((H1_PAD, 1), jnp.float32).at[:HIDDEN1, 0].set(b1)
    w2p = jnp.zeros((H2_PAD, H1_PAD), jnp.float32)
    w2p = w2p.at[:HIDDEN2, :HIDDEN1].set(w2).astype(compute_dtype)
    b2p = jnp.zeros((H2_PAD, 1), jnp.float32).at[:HIDDEN2, 0].set(b2)
    w3p = jnp.zeros((H2_PAD, 1), jnp.float32).at[:HIDDEN2, 0].set(w3[0])
    b3p = jnp.reshape(b3, (1, 1)).astype(jnp.float32)
    return (w1p, b1p, w2p, b2p, w3p, b3p)


def reference(x, params):
    """Plain-JAX f32 reference with the same semantics as the PyTorch forward."""
    w1, b1, w2, b2, w3, b3 = params
    h = jnp.maximum(x @ w1.T + b1, 0.0)
    h = jnp.maximum(h @ w2.T + b2, 0.0)
    return jnp.maximum(h @ w3.T + b3, 0.0)


def reference_mixed(x, params, compute_dtype):
    """Emulates the kernel's mixed-precision path (low-precision MXU inputs,
    f32 accumulation, f32 bias/ReLU, f32 final layer)."""
    w1, b1, w2, b2, w3, b3 = params
    h = jnp.dot(x.astype(compute_dtype), w1.astype(compute_dtype).T,
                preferred_element_type=jnp.float32) + b1
    h = jnp.maximum(h, 0.0)
    h = jnp.dot(h.astype(compute_dtype), w2.astype(compute_dtype).T,
                preferred_element_type=jnp.float32) + b2
    h = jnp.maximum(h, 0.0)
    return jnp.maximum(h @ w3.T + b3, 0.0)


if __name__ == "__main__":
    key = jax.random.PRNGKey(0)
    k_x, k_p = jax.random.split(key)

    batch = 8
    x = jax.random.normal(k_x, (batch, ENTRADAS), jnp.float32)
    params = init_params(k_p)

    # ---- f32 path: must match the PyTorch-equivalent reference exactly-ish.
    packed_f32 = pack_params(params, jnp.float32)
    out_f32 = jax.block_until_ready(mlp_forward(x, packed_f32))
    ref_f32 = reference(x, params)
    assert out_f32.shape == (batch, OUT)
    assert jnp.allclose(out_f32, ref_f32, atol=1e-5, rtol=1e-5), (
        "f32 mismatch vs reference: " + str(jnp.max(jnp.abs(out_f32 - ref_f32))))

    # ---- bf16 path (the bandwidth-optimized production setting).
    packed_bf16 = pack_params(params, jnp.bfloat16)
    out_bf16 = jax.block_until_ready(mlp_forward(x, packed_bf16))
    ref_bf16 = reference_mixed(x, params, jnp.bfloat16)
    assert out_bf16.shape == (batch, OUT)
    assert jnp.allclose(out_bf16, ref_bf16, atol=1e-2, rtol=1e-2), (
        "bf16 mismatch vs mixed reference: "
        + str(jnp.max(jnp.abs(out_bf16 - ref_bf16))))

    # ---- feature-major entry point (no extra transpose pass over x).
    out_fm = jax.block_until_ready(
        mlp_forward_feature_major(x.T, packed_f32))
    assert jnp.allclose(out_fm, ref_f32, atol=1e-5, rtol=1e-5), (
        "feature-major mismatch vs reference: "
        + str(jnp.max(jnp.abs(out_fm - ref_f32))))

    print("KERNEL_OK")
</pallas_src>

<mosaic_0001>
module attributes {stable_mosaic.version = 11 : i64} {
  func.func @mlp_kernel(%arg0: i32, %arg1: memref<8x128xf32, #tpu.memory_space<vmem>>, %arg2: memref<128x8xf32, #tpu.memory_space<vmem>>, %arg3: memref<128x1xf32, #tpu.memory_space<vmem>>, %arg4: memref<64x128xf32, #tpu.memory_space<vmem>>, %arg5: memref<64x1xf32, #tpu.memory_space<vmem>>, %arg6: memref<64x1xf32, #tpu.memory_space<vmem>>, %arg7: memref<1x1xf32, #tpu.memory_space<vmem>>, %arg8: memref<1x128xf32, #tpu.memory_space<vmem>>) attributes {dimension_semantics = [#tpu.dimension_semantics<parallel>], iteration_bounds = array<i64: 1>, scalar_prefetch = 0 : i64, scratch_operands = 0 : i64, tpu.core_type = #tpu.core_type<tc>, window_params = [{transform_indices = @transform_0, window_bounds = array<i64: 8, 128>}, {pipeline_mode = #tpu.pipeline_mode<synchronous>, transform_indices = @transform_1, window_bounds = array<i64: 128, 8>}, {pipeline_mode = #tpu.pipeline_mode<synchronous>, transform_indices = @transform_2, window_bounds = array<i64: 128, 1>}, {pipeline_mode = #tpu.pipeline_mode<synchronous>, transform_indices = @transform_3, window_bounds = array<i64: 64, 128>}, {pipeline_mode = #tpu.pipeline_mode<synchronous>, transform_indices = @transform_4, window_bounds = array<i64: 64, 1>}, {pipeline_mode = #tpu.pipeline_mode<synchronous>, transform_indices = @transform_5, window_bounds = array<i64: 64, 1>}, {pipeline_mode = #tpu.pipeline_mode<synchronous>, transform_indices = @transform_6, window_bounds = array<i64: 1, 1>}, {transform_indices = @transform_7, window_bounds = array<i64: 1, 128>}]} {
    %c0 = arith.constant 0 : index
    %c0_0 = arith.constant 0 : index
    %0 = vector.load %arg2[%c0, %c0_0] : memref<128x8xf32, #tpu.memory_space<vmem>>, vector<128x8xf32>
    %c0_1 = arith.constant 0 : index
    %c0_2 = arith.constant 0 : index
    %1 = vector.load %arg1[%c0_1, %c0_2] : memref<8x128xf32, #tpu.memory_space<vmem>>, vector<8x128xf32>
    %cst = arith.constant dense<0.000000e+00> : vector<128x128xf32>
    %2 = tpu.matmul %0, %1, %cst {dimension_numbers = #tpu.dot_dimension_numbers<[1], [0], [0], [1], [0, 0, 1, 1], [], []>} : vector<128x8xf32>, vector<8x128xf32>, vector<128x128xf32> -> vector<128x128xf32>
    %c0_3 = arith.constant 0 : index
    %c0_4 = arith.constant 0 : index
    %3 = vector.load %arg3[%c0_3, %c0_4] : memref<128x1xf32, #tpu.memory_space<vmem>>, vector<128x1xf32>
    %4 = vector.broadcast %3 : vector<128x1xf32> to vector<128x128xf32>
    %5 = arith.addf %2, %4 : vector<128x128xf32>
    %cst_5 = arith.constant 0.000000e+00 : f32
    %6 = vector.broadcast %cst_5 : f32 to vector<128x128xf32>
    %7 = arith.maximumf %5, %6 : vector<128x128xf32>
    %c0_6 = arith.constant 0 : index
    %c0_7 = arith.constant 0 : index
    %8 = vector.load %arg4[%c0_6, %c0_7] : memref<64x128xf32, #tpu.memory_space<vmem>>, vector<64x128xf32>
    %cst_8 = arith.constant dense<0.000000e+00> : vector<64x128xf32>
    %9 = tpu.matmul %8, %7, %cst_8 {dimension_numbers = #tpu.dot_dimension_numbers<[1], [0], [0], [1], [0, 0, 1, 1], [], []>} : vector<64x128xf32>, vector<128x128xf32>, vector<64x128xf32> -> vector<64x128xf32>
    %c0_9 = arith.constant 0 : index
    %c0_10 = arith.constant 0 : index
    %10 = vector.load %arg5[%c0_9, %c0_10] : memref<64x1xf32, #tpu.memory_space<vmem>>, vector<64x1xf32>
    %11 = vector.broadcast %10 : vector<64x1xf32> to vector<64x128xf32>
    %12 = arith.addf %9, %11 : vector<64x128xf32>
    %cst_11 = arith.constant 0.000000e+00 : f32
    %13 = vector.broadcast %cst_11 : f32 to vector<64x128xf32>
    %14 = arith.maximumf %12, %13 : vector<64x128xf32>
    %c0_12 = arith.constant 0 : index
    %c0_13 = arith.constant 0 : index
    %15 = vector.load %arg6[%c0_12, %c0_13] : memref<64x1xf32, #tpu.memory_space<vmem>>, vector<64x1xf32>
    %16 = vector.broadcast %15 : vector<64x1xf32> to vector<64x128xf32>
    %17 = arith.mulf %14, %16 : vector<64x128xf32>
    %cst_14 = arith.constant dense<0.000000e+00> : vector<128xf32>
    %18 = vector.multi_reduction <add>, %17, %cst_14 [0] : vector<64x128xf32> to vector<128xf32>
    %19 = vector.shape_cast %18 : vector<128xf32> to vector<1x128xf32>
    %c0_15 = arith.constant 0 : index
    %c0_16 = arith.constant 0 : index
    %20 = vector.load %arg7[%c0_15, %c0_16] : memref<1x1xf32, #tpu.memory_space<vmem>>, vector<1x1xf32>
    %21 = vector.broadcast %20 : vector<1x1xf32> to vector<1x128xf32>
    %22 = arith.addf %19, %21 : vector<1x128xf32>
    %cst_17 = arith.constant 0.000000e+00 : f32
    %23 = vector.broadcast %cst_17 : f32 to vector<1x128xf32>
    %24 = arith.maximumf %22, %23 : vector<1x128xf32>
    %c0_18 = arith.constant 0 : index
    %c0_19 = arith.constant 0 : index
    %25 = vector.load %arg8[%c0_18, %c0_19] : memref<1x128xf32, #tpu.memory_space<vmem>>, vector<1x128xf32>
    tpu.vector_store %arg8[%c0_18, %c0_19], %24 {strides = array<i32>} : memref<1x128xf32, #tpu.memory_space<vmem>>, vector<1x128xf32>,
    return
  }
  func.func @transform_0(%arg0: i32) -> (i32, i32) {
    %c0_i32 = arith.constant 0 : i32
    %c0_i32_0 = arith.constant 0 : i32
    return %c0_i32, %arg0 : i32, i32
  }
  func.func @transform_1(%arg0: i32) -> (i32, i32) {
    %c0_i32 = arith.constant 0 : i32
    %c0_i32_0 = arith.constant 0 : i32
    %c0_i32_1 = arith.constant 0 : i32
    return %c0_i32, %c0_i32_0 : i32, i32
  }
  func.func @transform_2(%arg0: i32) -> (i32, i32) {
    %c0_i32 = arith.constant 0 : i32
    %c0_i32_0 = arith.constant 0 : i32
    %c0_i32_1 = arith.constant 0 : i32
    return %c0_i32, %c0_i32_0 : i32, i32
  }
  func.func @transform_3(%arg0: i32) -> (i32, i32) {
    %c0_i32 = arith.constant 0 : i32
    %c0_i32_0 = arith.constant 0 : i32
    %c0_i32_1 = arith.constant 0 : i32
    return %c0_i32, %c0_i32_0 : i32, i32
  }
  func.func @transform_4(%arg0: i32) -> (i32, i32) {
    %c0_i32 = arith.constant 0 : i32
    %c0_i32_0 = arith.constant 0 : i32
    %c0_i32_1 = arith.constant 0 : i32
    return %c0_i32, %c0_i32_0 : i32, i32
  }
  func.func @transform_5(%arg0: i32) -> (i32, i32) {
    %c0_i32 = arith.constant 0 : i32
    %c0_i32_0 = arith.constant 0 : i32
    %c0_i32_1 = arith.constant 0 : i32
    return %c0_i32, %c0_i32_0 : i32, i32
  }
  func.func @transform_6(%arg0: i32) -> (i32, i32) {
    %c0_i32 = arith.constant 0 : i32
    %c0_i32_0 = arith.constant 0 : i32
    %c0_i32_1 = arith.constant 0 : i32
    return %c0_i32, %c0_i32_0 : i32, i32
  }
  func.func @transform_7(%arg0: i32) -> (i32, i32) {
    %c0_i32 = arith.constant 0 : i32
    %c0_i32_0 = arith.constant 0 : i32
    return %c0_i32, %arg0 : i32, i32
  }
}

</mosaic_0001>

<llo_original>
// kernel: tpu_custom_call.1
$region0: #{tpu_custom_call.1}
  #allocation0 [shape = 'u32[]', space=smem, size = 0x4, offset = 0x4, fixed_abs, tag = 'smem constant byte address 0x4 - core index']
  #allocation1 [shape = 'u32[144,128]{1,0:T(1,128)}', space=vmem, size = 0x12000, scoped, tag = 'internal scratch']
  #allocation2 [shape = 'f32[1,1]{1,0:T(1,128)S(1)}', space=vmem, size = 0x200, scoped, tag = 'scoped memory for tpu_custom_call.1']
  %s0 = inlined_call_operand.vmem [shape: f32[8,128], index: 0, kind: input, shape index: {}]
  %s1 = inlined_call_operand.vmem [shape: f32[128,8], index: 1, kind: input, shape index: {}]
  %s2 = inlined_call_operand.vmem [shape: f32[128,1], index: 2, kind: input, shape index: {}]
  %s3 = inlined_call_operand.vmem [shape: f32[64,128], index: 3, kind: input, shape index: {}]
  %s4 = inlined_call_operand.vmem [shape: f32[64,1], index: 4, kind: input, shape index: {}]
  %s5 = inlined_call_operand.vmem [shape: f32[64,1], index: 5, kind: input, shape index: {}]
  %s6 = inlined_call_operand.<no memory space> [shape: f32[1,1], index: 6, kind: input, shape index: {}]
  %s7 = inlined_call_operand.hbm [shape: f32[1,128], index: 7, kind: output, shape index: {}]
  %s8 = sld [smem:[#allocation0]]
  $region38: #{tpu_custom_call.1} parent=0
    _
  %s10 = ssub.s32 1, %s8
  %s11 = scalar_select 0, %s10, %s8
  %v12 = vstv %s6
  %13 = vst [vmem:[#allocation2] sm:$0x1] %v12
  $region1: #{tpu_custom_call.1} parent=0
    #allocation3 [shape = 'u8[512]{0}', space=vmem, size = 0x400, scoped, tag = 'output window, operand 0, single buffered']
    #allocation4 [shape = 's32[1]{0}', space=sflag, size = 0x4, scoped, tag = 'scoped memory for tpu_custom_call.1']
    %14 = vsyncpa [#allocation4], 0
    // Predicated region
    $region2: #{tpu_custom_call.1} parent=1 // pred_check
      _
    $region3: #{tpu_custom_call.1} parent=1 // pred_check_branch
      %16 = sbr.rel (0) target = $region5
    $region4: #{tpu_custom_call.1} parent=1 // pred_region
      _
    $region5: #{tpu_custom_call.1} parent=1 // pred_fallthru
      _
    // Predicated region
    $region6: #{tpu_custom_call.1} parent=1 // pred_check
      _
    $region7: #{tpu_custom_call.1} parent=1 // pred_check_branch
      %18 = sbr.rel (0) target = $region9
    $region8: #{tpu_custom_call.1} parent=1 // pred_region
      _
    $region9: #{tpu_custom_call.1} parent=1 // pred_fallthru
      _
    // Predicated region
    $region10: #{tpu_custom_call.1} parent=1 // pred_check
      _
    $region11: #{tpu_custom_call.1} parent=1 // pred_check_branch
      %20 = sbr.rel (0) target = $region13
    $region12: #{tpu_custom_call.1} parent=1 // pred_region
      _
    $region13: #{tpu_custom_call.1} parent=1 // pred_fallthru
      _
    // Predicated region
    $region14: #{tpu_custom_call.1} parent=1 // pred_check
      _
    $region15: #{tpu_custom_call.1} parent=1 // pred_check_branch
      %22 = sbr.rel (0) target = $region17
    $region16: #{tpu_custom_call.1} parent=1 // pred_region
      _
    $region17: #{tpu_custom_call.1} parent=1 // pred_fallthru
      _
    // Predicated region
    $region18: #{tpu_custom_call.1} parent=1 // pred_check
      _
    $region19: #{tpu_custom_call.1} parent=1 // pred_check_branch
      %24 = sbr.rel (0) target = $region21
    $region20: #{tpu_custom_call.1} parent=1 // pred_region
      _
    $region21: #{tpu_custom_call.1} parent=1 // pred_fallthru
      _
    // Predicated region
    $region22: #{tpu_custom_call.1} parent=1 // pred_check
      _
    $region23: #{tpu_custom_call.1} parent=1 // pred_check_branch
      %26 = sbr.rel (0) target = $region25
    $region24: #{tpu_custom_call.1} parent=1 // pred_region
      _
    $region25: #{tpu_custom_call.1} parent=1 // pred_fallthru
      _
    // Predicated region
    $region26: #{tpu_custom_call.1} parent=1 // pred_check
      _
    $region27: #{tpu_custom_call.1} parent=1 // pred_check_branch
      %28 = sbr.rel (0) target = $region29
    $region28: #{tpu_custom_call.1} parent=1 // pred_region
      _
    $region29: #{tpu_custom_call.1} parent=1 // pred_fallthru
      _
    %v29 = vld [vmem:[%s1] sm:$0xff]
    %v30 = vld [vmem:[%s1 + $0x8] sm:$0xff]
    %v31 = vld [vmem:[%s1 + $0x10] sm:$0xff]
    %v32 = vld [vmem:[%s1 + $0x18] sm:$0xff]
    %v33 = vld [vmem:[%s1 + $0x20] sm:$0xff]
    %v34 = vld [vmem:[%s1 + $0x28] sm:$0xff]
    %v35 = vld [vmem:[%s1 + $0x30] sm:$0xff]
    %v36 = vld [vmem:[%s1 + $0x38] sm:$0xff]
    %v37 = vld [vmem:[%s1 + $0x40] sm:$0xff]
    %v38 = vld [vmem:[%s1 + $0x48] sm:$0xff]
    %v39 = vld [vmem:[%s1 + $0x50] sm:$0xff]
    %v40 = vld [vmem:[%s1 + $0x58] sm:$0xff]
    %v41 = vld [vmem:[%s1 + $0x60] sm:$0xff]
    %v42 = vld [vmem:[%s1 + $0x68] sm:$0xff]
    %v43 = vld [vmem:[%s1 + $0x70] sm:$0xff]
    %v44 = vld [vmem:[%s1 + $0x78] sm:$0xff]
    %v45 = vld [vmem:[%s0] sm:$0xff]
    %v46 = vld [vmem:[%s2] sm:$0xff]
    %v47 = vld [vmem:[%s2 + $0x8] sm:$0xff]
    %v48 = vld [vmem:[%s2 + $0x10] sm:$0xff]
    %v49 = vld [vmem:[%s2 + $0x18] sm:$0xff]
    %v50 = vld [vmem:[%s2 + $0x20] sm:$0xff]
    %v51 = vld [vmem:[%s2 + $0x28] sm:$0xff]
    %v52 = vld [vmem:[%s2 + $0x30] sm:$0xff]
    %v53 = vld [vmem:[%s2 + $0x38] sm:$0xff]
    %v54 = vld [vmem:[%s2 + $0x40] sm:$0xff]
    %v55 = vld [vmem:[%s2 + $0x48] sm:$0xff]
    %v56 = vld [vmem:[%s2 + $0x50] sm:$0xff]
    %v57 = vld [vmem:[%s2 + $0x58] sm:$0xff]
    %v58 = vld [vmem:[%s2 + $0x60] sm:$0xff]
    %v59 = vld [vmem:[%s2 + $0x68] sm:$0xff]
    %v60 = vld [vmem:[%s2 + $0x70] sm:$0xff]
    %v61 = vld [vmem:[%s2 + $0x78] sm:$0xff]
    %63 = vset.pattern.permute.xlu0 0
    %64 = vperm.xlu0 %63, %v46
    %v65 = vpop.permute.xlu0 %64
    %68 = vset.pattern.permute.xlu0 0
    %69 = vperm.xlu0 %68, %v47
    %v70 = vpop.permute.xlu0 %69
    %73 = vset.pattern.permute.xlu0 0
    %74 = vperm.xlu0 %73, %v48
    %v75 = vpop.permute.xlu0 %74
    %78 = vset.pattern.permute.xlu0 0
    %79 = vperm.xlu0 %78, %v49
    %v80 = vpop.permute.xlu0 %79
    %83 = vset.pattern.permute.xlu0 0
    %84 = vperm.xlu0 %83, %v50
    %v85 = vpop.permute.xlu0 %84
    %88 = vset.pattern.permute.xlu0 0
    %89 = vperm.xlu0 %88, %v51
    %v90 = vpop.permute.xlu0 %89
    %93 = vset.pattern.permute.xlu0 0
    %94 = vperm.xlu0 %93, %v52
    %v95 = vpop.permute.xlu0 %94
    %98 = vset.pattern.permute.xlu0 0
    %99 = vperm.xlu0 %98, %v53
    %v100 = vpop.permute.xlu0 %99
    %103 = vset.pattern.permute.xlu0 0
    %104 = vperm.xlu0 %103, %v54
    %v105 = vpop.permute.xlu0 %104
    %108 = vset.pattern.permute.xlu0 0
    %109 = vperm.xlu0 %108, %v55
    %v110 = vpop.permute.xlu0 %109
    %113 = vset.pattern.permute.xlu0 0
    %114 = vperm.xlu0 %113, %v56
    %v115 = vpop.permute.xlu0 %114
    %118 = vset.pattern.permute.xlu0 0
    %119 = vperm.xlu0 %118, %v57
    %v120 = vpop.permute.xlu0 %119
    %123 = vset.pattern.permute.xlu0 0
    %124 = vperm.xlu0 %123, %v58
    %v125 = vpop.permute.xlu0 %124
    %128 = vset.pattern.permute.xlu0 0
    %129 = vperm.xlu0 %128, %v59
    %v130 = vpop.permute.xlu0 %129
    %133 = vset.pattern.permute.xlu0 0
    %134 = vperm.xlu0 %133, %v60
    %v135 = vpop.permute.xlu0 %134
    %138 = vset.pattern.permute.xlu0 0
    %139 = vperm.xlu0 %138, %v61
    %v140 = vpop.permute.xlu0 %139
    %vm142 = vcmask 64512
    %v144 = vsel %vm142, %v29, 0
    %v147 = vsel %vm142, %v30, 0
    %v150 = vsel %vm142, %v31, 0
    %v153 = vsel %vm142, %v32, 0
    %v156 = vsel %vm142, %v33, 0
    %v159 = vsel %vm142, %v34, 0
    %v162 = vsel %vm142, %v35, 0
    %v165 = vsel %vm142, %v36, 0
    %v168 = vsel %vm142, %v37, 0
    %v171 = vsel %vm142, %v38, 0
    %v174 = vsel %vm142, %v39, 0
    %v177 = vsel %vm142, %v40, 0
    %v180 = vsel %vm142, %v41, 0
    %v183 = vsel %vm142, %v42, 0
    %v186 = vsel %vm142, %v43, 0
    %v189 = vsel %vm142, %v44, 0
    %191 = vmatprep.subr.mxu0 0.0
    %192 = vmatpush1.msra.mxu0 %v45
    %193 = vmatprep.subr.mxu0 0.0
    %194 = vmatpush1.msra.mxu0 0.0
    %195 = vmatprep.subr.mxu0 0.0
    %196 = vmatpush1.msra.mxu0 0.0
    %197 = vmatprep.subr.mxu0 0.0
    %198 = vmatpush1.msra.mxu0 0.0
    %199 = vmatprep.subr.mxu0 0.0
    %200 = vmatpush1.msra.mxu0 0.0
    %201 = vmatprep.subr.mxu0 0.0
    %202 = vmatpush1.msra.mxu0 0.0
    %203 = vmatprep.subr.mxu0 0.0
    %204 = vmatpush1.msra.mxu0 0.0
    %205 = vmatprep.subr.mxu0 0.0
    %206 = vmatpush1.msra.mxu0 0.0
    %207 = vmatprep.subr.mxu0 0.0
    %208 = vmatpush1.msra.mxu0 0.0
    %209 = vmatprep.subr.mxu0 0.0
    %210 = vmatpush1.msra.mxu0 0.0
    %211 = vmatprep.subr.mxu0 0.0
    %212 = vmatpush1.msra.mxu0 0.0
    %213 = vmatprep.subr.mxu0 0.0
    %214 = vmatpush1.msra.mxu0 0.0
    %215 = vmatprep.subr.mxu0 0.0
    %216 = vmatpush1.msra.mxu0 0.0
    %217 = vmatprep.subr.mxu0 0.0
    %218 = vmatpush1.msra.mxu0 0.0
    %219 = vmatprep.subr.mxu0 0.0
    %220 = vmatpush1.msra.mxu0 0.0
    %221 = vmatprep.subr.mxu0 0.0
    %222 = vmatpush1.msra.mxu0 0.0
    %223 = vmatprep.subr.mxu0 0.0
    %224 = vmatpush1.msra.mxu0 0.0
    %225 = vmatprep.subr.mxu0 0.0
    %226 = vmatpush1.msra.mxu0 0.0
    %227 = vmatprep.subr.mxu0 0.0
    %228 = vmatpush1.msra.mxu0 0.0
    %229 = vmatprep.subr.mxu0 0.0
    %230 = vmatpush1.msra.mxu0 0.0
    %231 = vmatprep.subr.mxu0 0.0
    %232 = vmatpush1.msra.mxu0 0.0
    %233 = vmatprep.subr.mxu0 0.0
    %234 = vmatpush1.msra.mxu0 0.0
    %235 = vmatprep.subr.mxu0 0.0
    %236 = vmatpush1.msra.mxu0 0.0
    %237 = vmatprep.subr.mxu0 0.0
    %238 = vmatpush1.msra.mxu0 0.0
    %239 = vmatprep.subr.mxu0 0.0
    %240 = vmatpush1.msra.mxu0 0.0
    %241 = vmatprep.subr.mxu0 0.0
    %242 = vmatpush1.msra.mxu0 0.0
    %243 = vmatprep.subr.mxu0 0.0
    %244 = vmatpush1.msra.mxu0 0.0
    %245 = vmatprep.subr.mxu0 0.0
    %246 = vmatpush1.msra.mxu0 0.0
    %247 = vmatprep.subr.mxu0 0.0
    %248 = vmatpush1.msra.mxu0 0.0
    %249 = vmatprep.subr.mxu0 0.0
    %250 = vmatpush1.msra.mxu0 0.0
    %251 = vmatprep.subr.mxu0 0.0
    %252 = vmatpush1.msra.mxu0 0.0
    %253 = vmatprep.subr.mxu0 0.0
    %254 = vmatpush1.msra.mxu0 0.0
    %255 = vmatprep.mubr.f32.mxu0 0.0
    %256 = vmatmul.mubr.f32.gmra.mrb[0].mxu0 %v144
    %v257 = vpop.f32.mrb[0].mxu0
    %v258 = vadd.f32 %v65, %v257
    %v259 = vpop.f32.mrb[0].mxu0
    %260 = vmatprep.mubr.f32.mxu0 0.0
    %261 = vmatmul.mubr.f32.gmra.mrb[0].mxu0 %v147
    %v262 = vpop.f32.mrb[0].mxu0
    %v263 = vadd.f32 %v70, %v262
    %v264 = vpop.f32.mrb[0].mxu0
    %265 = vmatprep.mubr.f32.mxu0 0.0
    %266 = vmatmul.mubr.f32.gmra.mrb[0].mxu0 %v150
    %v267 = vpop.f32.mrb[0].mxu0
    %v268 = vadd.f32 %v75, %v267
    %v269 = vpop.f32.mrb[0].mxu0
    %270 = vmatprep.mubr.f32.mxu0 0.0
    %271 = vmatmul.mubr.f32.gmra.mrb[0].mxu0 %v153
    %v272 = vpop.f32.mrb[0].mxu0
    %v273 = vadd.f32 %v80, %v272
    %v274 = vpop.f32.mrb[0].mxu0
    %275 = vmatprep.mubr.f32.mxu0 0.0
    %276 = vmatmul.mubr.f32.gmra.mrb[0].mxu0 %v156
    %v277 = vpop.f32.mrb[0].mxu0
    %v278 = vadd.f32 %v85, %v277
    %v279 = vpop.f32.mrb[0].mxu0
    %280 = vmatprep.mubr.f32.mxu0 0.0
    %281 = vmatmul.mubr.f32.gmra.mrb[0].mxu0 %v159
    %v282 = vpop.f32.mrb[0].mxu0
    %v283 = vadd.f32 %v90, %v282
    %v284 = vpop.f32.mrb[0].mxu0
    %285 = vmatprep.mubr.f32.mxu0 0.0
    %286 = vmatmul.mubr.f32.gmra.mrb[0].mxu0 %v162
    %v287 = vpop.f32.mrb[0].mxu0
    %v288 = vadd.f32 %v95, %v287
    %v289 = vpop.f32.mrb[0].mxu0
    %290 = vmatprep.mubr.f32.mxu0 0.0
    %291 = vmatmul.mubr.f32.gmra.mrb[0].mxu0 %v165
    %v292 = vpop.f32.mrb[0].mxu0
    %v293 = vadd.f32 %v100, %v292
    %v294 = vpop.f32.mrb[0].mxu0
    %295 = vmatprep.mubr.f32.mxu0 0.0
    %296 = vmatmul.mubr.f32.gmra.mrb[0].mxu0 %v168
    %v297 = vpop.f32.mrb[0].mxu0
    %v298 = vadd.f32 %v105, %v297
    %v299 = vpop.f32.mrb[0].mxu0
    %300 = vmatprep.mubr.f32.mxu0 0.0
    %301 = vmatmul.mubr.f32.gmra.mrb[0].mxu0 %v171
    %v302 = vpop.f32.mrb[0].mxu0
    %v303 = vadd.f32 %v110, %v302
    %v304 = vpop.f32.mrb[0].mxu0
    %305 = vmatprep.mubr.f32.mxu0 0.0
    %306 = vmatmul.mubr.f32.gmra.mrb[0].mxu0 %v174
    %v307 = vpop.f32.mrb[0].mxu0
    %v308 = vadd.f32 %v115, %v307
    %v309 = vpop.f32.mrb[0].mxu0
    %310 = vmatprep.mubr.f32.mxu0 0.0
    %311 = vmatmul.mubr.f32.gmra.mrb[0].mxu0 %v177
    %v312 = vpop.f32.mrb[0].mxu0
    %v313 = vadd.f32 %v120, %v312
    %v314 = vpop.f32.mrb[0].mxu0
    %315 = vmatprep.mubr.f32.mxu0 0.0
    %316 = vmatmul.mubr.f32.gmra.mrb[0].mxu0 %v180
    %v317 = vpop.f32.mrb[0].mxu0
    %v318 = vadd.f32 %v125, %v317
    %v319 = vpop.f32.mrb[0].mxu0
    %320 = vmatprep.mubr.f32.mxu0 0.0
    %321 = vmatmul.mubr.f32.gmra.mrb[0].mxu0 %v183
    %v322 = vpop.f32.mrb[0].mxu0
    %v323 = vadd.f32 %v130, %v322
    %v324 = vpop.f32.mrb[0].mxu0
    %325 = vmatprep.mubr.f32.mxu0 0.0
    %326 = vmatmul.mubr.f32.gmra.mrb[0].mxu0 %v186
    %v327 = vpop.f32.mrb[0].mxu0
    %v328 = vadd.f32 %v135, %v327
    %v329 = vpop.f32.mrb[0].mxu0
    %330 = vmatprep.mubr.f32.mxu0 0.0
    %331 = vmatmul.mubr.f32.gmra.mrb[0].mxu0 %v189
    %v332 = vpop.f32.mrb[0].mxu0
    %v333 = vadd.f32 %v140, %v332
    %v334 = vpop.f32.mrb[0].mxu0
    %335 = vdwg.mxu0
    %v336 = vmax.f32 %v258, 0.0
    %v337 = vmax.f32 %v263, 0.0
    %v338 = vmax.f32 %v268, 0.0
    %v339 = vmax.f32 %v273, 0.0
    %v340 = vmax.f32 %v278, 0.0
    %v341 = vmax.f32 %v283, 0.0
    %v342 = vmax.f32 %v288, 0.0
    %v343 = vmax.f32 %v293, 0.0
    %v344 = vmax.f32 %v298, 0.0
    %v345 = vmax.f32 %v303, 0.0
    %v346 = vmax.f32 %v308, 0.0
    %v347 = vmax.f32 %v313, 0.0
    %v348 = vmax.f32 %v318, 0.0
    %v349 = vmax.f32 %v323, 0.0
    %v350 = vmax.f32 %v328, 0.0
    %v351 = vmax.f32 %v333, 0.0
    %v352 = vld [vmem:[%s3] sm:$0xff]
    %v353 = vld [vmem:[%s3 + $0x8] sm:$0xff]
    %v354 = vld [vmem:[%s3 + $0x10] sm:$0xff]
    %v355 = vld [vmem:[%s3 + $0x18] sm:$0xff]
    %v356 = vld [vmem:[%s3 + $0x20] sm:$0xff]
    %v357 = vld [vmem:[%s3 + $0x28] sm:$0xff]
    %v358 = vld [vmem:[%s3 + $0x30] sm:$0xff]
    %v359 = vld [vmem:[%s3 + $0x38] sm:$0xff]
    %v360 = vld [vmem:[%s4] sm:$0xff]
    %v361 = vld [vmem:[%s4 + $0x8] sm:$0xff]
    %v362 = vld [vmem:[%s4 + $0x10] sm:$0xff]
    %v363 = vld [vmem:[%s4 + $0x18] sm:$0xff]
    %v364 = vld [vmem:[%s4 + $0x20] sm:$0xff]
    %v365 = vld [vmem:[%s4 + $0x28] sm:$0xff]
    %v366 = vld [vmem:[%s4 + $0x30] sm:$0xff]
    %v367 = vld [vmem:[%s4 + $0x38] sm:$0xff]
    %369 = vset.pattern.permute.xlu0 0
    %370 = vperm.xlu0 %369, %v360
    %v371 = vpop.permute.xlu0 %370
    %374 = vset.pattern.permute.xlu0 0
    %375 = vperm.xlu0 %374, %v361
    %v376 = vpop.permute.xlu0 %375
    %379 = vset.pattern.permute.xlu0 0
    %380 = vperm.xlu0 %379, %v362
    %v381 = vpop.permute.xlu0 %380
    %384 = vset.pattern.permute.xlu0 0
    %385 = vperm.xlu0 %384, %v363
    %v386 = vpop.permute.xlu0 %385
    %389 = vset.pattern.permute.xlu0 0
    %390 = vperm.xlu0 %389, %v364
    %v391 = vpop.permute.xlu0 %390
    %394 = vset.pattern.permute.xlu0 0
    %395 = vperm.xlu0 %394, %v365
    %v396 = vpop.permute.xlu0 %395
    %399 = vset.pattern.permute.xlu0 0
    %400 = vperm.xlu0 %399, %v366
    %v401 = vpop.permute.xlu0 %400
    %404 = vset.pattern.permute.xlu0 0
    %405 = vperm.xlu0 %404, %v367
    %v406 = vpop.permute.xlu0 %405
    %408 = vmatprep.subr.mxu0 0.0
    %409 = vmatpush1.msra.mxu0 %v336
    %410 = vmatprep.subr.mxu0 0.0
    %411 = vmatpush1.msra.mxu0 %v337
    %412 = vmatprep.subr.mxu0 0.0
    %413 = vmatpush1.msra.mxu0 %v338
    %414 = vmatprep.subr.mxu0 0.0
    %415 = vmatpush1.msra.mxu0 %v339
    %416 = vmatprep.subr.mxu0 0.0
    %417 = vmatpush1.msra.mxu0 %v340
    %418 = vmatprep.subr.mxu0 0.0
    %419 = vmatpush1.msra.mxu0 %v341
    %420 = vmatprep.subr.mxu0 0.0
    %421 = vmatpush1.msra.mxu0 %v342
    %422 = vmatprep.subr.mxu0 0.0
    %423 = vmatpush1.msra.mxu0 %v343
    %424 = vmatprep.subr.mxu0 0.0
    %425 = vmatpush1.msra.mxu0 %v344
    %426 = vmatprep.subr.mxu0 0.0
    %427 = vmatpush1.msra.mxu0 %v345
    %428 = vmatprep.subr.mxu0 0.0
    %429 = vmatpush1.msra.mxu0 %v346
    %430 = vmatprep.subr.mxu0 0.0
    %431 = vmatpush1.msra.mxu0 %v347
    %432 = vmatprep.subr.mxu0 0.0
    %433 = vmatpush1.msra.mxu0 %v348
    %434 = vmatprep.subr.mxu0 0.0
    %435 = vmatpush1.msra.mxu0 %v349
    %436 = vmatprep.subr.mxu0 0.0
    %437 = vmatpush1.msra.mxu0 %v350
    %438 = vmatprep.subr.mxu0 0.0
    %439 = vmatpush1.msra.mxu0 %v351
    %440 = vmatprep.subr.mxu0 0.0
    %441 = vmatpush1.msra.mxu0 0.0
    %442 = vmatprep.subr.mxu0 0.0
    %443 = vmatpush1.msra.mxu0 0.0
    %444 = vmatprep.subr.mxu0 0.0
    %445 = vmatpush1.msra.mxu0 0.0
    %446 = vmatprep.subr.mxu0 0.0
    %447 = vmatpush1.msra.mxu0 0.0
    %448 = vmatprep.subr.mxu0 0.0
    %449 = vmatpush1.msra.mxu0 0.0
    %450 = vmatprep.subr.mxu0 0.0
    %451 = vmatpush1.msra.mxu0 0.0
    %452 = vmatprep.subr.mxu0 0.0
    %453 = vmatpush1.msra.mxu0 0.0
    %454 = vmatprep.subr.mxu0 0.0
    %455 = vmatpush1.msra.mxu0 0.0
    %456 = vmatprep.subr.mxu0 0.0
    %457 = vmatpush1.msra.mxu0 0.0
    %458 = vmatprep.subr.mxu0 0.0
    %459 = vmatpush1.msra.mxu0 0.0
    %460 = vmatprep.subr.mxu0 0.0
    %461 = vmatpush1.msra.mxu0 0.0
    %462 = vmatprep.subr.mxu0 0.0
    %463 = vmatpush1.msra.mxu0 0.0
    %464 = vmatprep.subr.mxu0 0.0
    %465 = vmatpush1.msra.mxu0 0.0
    %466 = vmatprep.subr.mxu0 0.0
    %467 = vmatpush1.msra.mxu0 0.0
    %468 = vmatprep.subr.mxu0 0.0
    %469 = vmatpush1.msra.mxu0 0.0
    %470 = vmatprep.subr.mxu0 0.0
    %471 = vmatpush1.msra.mxu0 0.0
    %472 = vmatprep.mubr.f32.mxu0 0.0
    %473 = vmatmul.mubr.f32.gmra.mrb[0].mxu0 %v352
    %v474 = vpop.f32.mrb[0].mxu0
    %v475 = vadd.f32 %v371, %v474
    %v476 = vpop.f32.mrb[0].mxu0
    %477 = vmatprep.mubr.f32.mxu0 0.0
    %478 = vmatmul.mubr.f32.gmra.mrb[0].mxu0 %v353
    %v479 = vpop.f32.mrb[0].mxu0
    %v480 = vadd.f32 %v376, %v479
    %v481 = vpop.f32.mrb[0].mxu0
    %482 = vmatprep.mubr.f32.mxu0 0.0
    %483 = vmatmul.mubr.f32.gmra.mrb[0].mxu0 %v354
    %v484 = vpop.f32.mrb[0].mxu0
    %v485 = vadd.f32 %v381, %v484
    %v486 = vpop.f32.mrb[0].mxu0
    %487 = vmatprep.mubr.f32.mxu0 0.0
    %488 = vmatmul.mubr.f32.gmra.mrb[0].mxu0 %v355
    %v489 = vpop.f32.mrb[0].mxu0
    %v490 = vadd.f32 %v386, %v489
    %v491 = vpop.f32.mrb[0].mxu0
    %492 = vmatprep.mubr.f32.mxu0 0.0
    %493 = vmatmul.mubr.f32.gmra.mrb[0].mxu0 %v356
    %v494 = vpop.f32.mrb[0].mxu0
    %v495 = vadd.f32 %v391, %v494
    %v496 = vpop.f32.mrb[0].mxu0
    %497 = vmatprep.mubr.f32.mxu0 0.0
    %498 = vmatmul.mubr.f32.gmra.mrb[0].mxu0 %v357
    %v499 = vpop.f32.mrb[0].mxu0
    %v500 = vadd.f32 %v396, %v499
    %v501 = vpop.f32.mrb[0].mxu0
    %502 = vmatprep.mubr.f32.mxu0 0.0
    %503 = vmatmul.mubr.f32.gmra.mrb[0].mxu0 %v358
    %v504 = vpop.f32.mrb[0].mxu0
    %v505 = vadd.f32 %v401, %v504
    %v506 = vpop.f32.mrb[0].mxu0
    %507 = vmatprep.mubr.f32.mxu0 0.0
    %508 = vmatmul.mubr.f32.gmra.mrb[0].mxu0 %v359
    %v509 = vpop.f32.mrb[0].mxu0
    %v510 = vadd.f32 %v406, %v509
    %v511 = vpop.f32.mrb[0].mxu0
    %512 = vdwg.mxu0
    %v513 = vmax.f32 %v475, 0.0
    %v514 = vmax.f32 %v480, 0.0
    %v515 = vmax.f32 %v485, 0.0
    %v516 = vmax.f32 %v490, 0.0
    %v517 = vmax.f32 %v495, 0.0
    %v518 = vmax.f32 %v500, 0.0
    %v519 = vmax.f32 %v505, 0.0
    %v520 = vmax.f32 %v510, 0.0
    %v521 = vld [vmem:[%s5] sm:$0xff]
    %v522 = vld [vmem:[%s5 + $0x8] sm:$0xff]
    %v523 = vld [vmem:[%s5 + $0x10] sm:$0xff]
    %v524 = vld [vmem:[%s5 + $0x18] sm:$0xff]
    %v525 = vld [vmem:[%s5 + $0x20] sm:$0xff]
    %v526 = vld [vmem:[%s5 + $0x28] sm:$0xff]
    %v527 = vld [vmem:[%s5 + $0x30] sm:$0xff]
    %v528 = vld [vmem:[%s5 + $0x38] sm:$0xff]
    %530 = vset.pattern.permute.xlu0 0
    %531 = vperm.xlu0 %530, %v521
    %v532 = vpop.permute.xlu0 %531
    %535 = vset.pattern.permute.xlu0 0
    %536 = vperm.xlu0 %535, %v522
    %v537 = vpop.permute.xlu0 %536
    %540 = vset.pattern.permute.xlu0 0
    %541 = vperm.xlu0 %540, %v523
    %v542 = vpop.permute.xlu0 %541
    %545 = vset.pattern.permute.xlu0 0
    %546 = vperm.xlu0 %545, %v524
    %v547 = vpop.permute.xlu0 %546
    %550 = vset.pattern.permute.xlu0 0
    %551 = vperm.xlu0 %550, %v525
    %v552 = vpop.permute.xlu0 %551
    %555 = vset.pattern.permute.xlu0 0
    %556 = vperm.xlu0 %555, %v526
    %v557 = vpop.permute.xlu0 %556
    %560 = vset.pattern.permute.xlu0 0
    %561 = vperm.xlu0 %560, %v527
    %v562 = vpop.permute.xlu0 %561
    %565 = vset.pattern.permute.xlu0 0
    %566 = vperm.xlu0 %565, %v528
    %v567 = vpop.permute.xlu0 %566
    %v569 = vmul.f32 %v513, %v532
    %v570 = vmul.f32 %v514, %v537
    %v571 = vmul.f32 %v515, %v542
    %v572 = vmul.f32 %v516, %v547
    %v573 = vmul.f32 %v517, %v552
    %v574 = vmul.f32 %v518, %v557
    %v575 = vmul.f32 %v519, %v562
    %v576 = vmul.f32 %v520, %v567
    %v577 = vadd.f32 %v569, %v570
    %v578 = vadd.f32 %v577, %v571
    %v579 = vadd.f32 %v578, %v572
    %v580 = vadd.f32 %v579, %v573
    %v581 = vadd.f32 %v580, %v574
    %v582 = vadd.f32 %v581, %v575
    %v583 = vadd.f32 %v582, %v576
    %v584 = vrot.slane %v583, 4
    %v585 = vadd.f32 %v583, %v584
    %v586 = vrot.slane %v585, 2
    %v587 = vadd.f32 %v585, %v586
    %v588 = vrot.slane %v587, 1
    %v589 = vadd.f32 %v587, %v588
    %v590 = vld [vmem:[#allocation2] sm:$0x1]
    %592 = vset.pattern.permute.xlu0 0
    %593 = vperm.xlu0 %592, %v590
    %v594 = vpop.permute.xlu0 %593
    %v596 = vlaneseq
    %v597 = vshrl.u32 %v596, 7
    %v598 = vsub.s32 0, %v597
    %v599 = vrot.slane %v594, %v598
    %v600 = vadd.f32 %v589, %v599
    %v601 = vmax.f32 %v600, 0.0
    %602 = vst [vmem:[#allocation3] sm:$0x1] %v601
    // Predicated region
    $region30: #{tpu_custom_call.1} parent=1 // pred_check
      _
    $region31: #{tpu_custom_call.1} parent=1 // pred_check_branch
      %604 = sbr.rel (0) target = $region33
    $region32: #{tpu_custom_call.1} parent=1 // pred_region
      %s606 = ssub.s32 16, 16
      %607 = vsyncadd [#allocation4], %s606
      %s609 = sshll.u32 [#allocation3], 4
      %s610 = int_to_ptr.vmem [resolvable:$true] %s609
      %612 = dma.vmem_to_hbm [thread:$0]  %s610, 16, %s7, [#allocation4]
    $region33: #{tpu_custom_call.1} parent=1 // pred_fallthru
      _
    // Predicated region
    $region34: #{tpu_custom_call.1} parent=1 // pred_check
      _
    $region35: #{tpu_custom_call.1} parent=1 // pred_check_branch
      %614 = sbr.rel (0) target = $region37
    $region36: #{tpu_custom_call.1} parent=1 // pred_region
      %615 = dma.done [#allocation4], 16
    $region37: #{tpu_custom_call.1} parent=1 // pred_fallthru
      _
    %616 = vsyncpa [#allocation4], 1

</llo_original>
